<compile_context>
chip_gen: v7x
topology: tpu7x:2x2x1
jax: 0.10.0
libtpu: 0.0.40
codegen_flags: <defaults>
</compile_context>

<pallas_src>
import functools

import jax
import jax.numpy as jnp
from jax.experimental import pallas as pl
from jax.experimental.pallas import tpu as pltpu


def _round_up(x: int, m: int) -> int:
    return (x + m - 1) // m * m


def _tpu_budgets():
    """Returns (target block bytes, vmem_limit_bytes), gated on VMEM capacity."""
    try:
        info = pltpu.get_tpu_info()
        vmem = getattr(info, "vmem_capacity_bytes", 64 * 1024 * 1024)
    except Exception:
        vmem = 64 * 1024 * 1024  # conservative (v7x-like) fallback
    if vmem >= 100 * 1024 * 1024:          # v5e / v6e: 128 MiB physical VMEM
        return 4 * 1024 * 1024, 64 * 1024 * 1024
    return 2 * 1024 * 1024, 28 * 1024 * 1024   # v7x: 64 MiB physical VMEM


def _pick_tile_rows(n_rows: int, c: int, itemsize: int, target_bytes: int) -> int:
    """Row-tile size so one (lane-padded) input block is ~target_bytes."""
    row_bytes = _round_up(max(c, 1), 128) * itemsize   # VMEM pads lanes to 128
    t = target_bytes // max(row_bytes, 1)
    t = max(8, min(8192, _round_up(max(t, 1), 8)))
    return min(t, _round_up(n_rows, 8))


# ---------------------------------------------------------------------------
# Cross-entropy: one partial row-sum per row-tile (parallel grid axis).
# ---------------------------------------------------------------------------
def _ce_partial_kernel(n_valid, yp_ref, yt_ref, out_ref):
    pid = pl.program_id(0)
    logits = yp_ref[...].astype(jnp.float32)          # [TN, C]
    tgt = yt_ref[...]                                  # [TN, 1] int32
    tn, c = logits.shape

    m = jnp.max(logits, axis=-1, keepdims=True)                              # [TN,1]
    lse = jnp.log(jnp.sum(jnp.exp(logits - m), axis=-1, keepdims=True)) + m  # [TN,1]

    class_iota = jax.lax.broadcasted_iota(jnp.int32, (tn, c), 1)
    picked = jnp.sum(jnp.where(class_iota == tgt, logits, 0.0),
                     axis=-1, keepdims=True)                                 # [TN,1]

    # Ragged edge tile: rows >= n_valid contain garbage. jnp.where (not a
    # multiply mask) so inf/NaN from garbage rows cannot leak into the sum.
    row_ids = pid * tn + jax.lax.broadcasted_iota(jnp.int32, (tn, 1), 0)
    per_row = jnp.where(row_ids < n_valid, lse - picked, 0.0)

    out_ref[...] = jnp.sum(per_row).reshape(1, 1, 1)


def _cross_entropy_mean(y_pred, y_target):
    n, c = y_pred.shape
    target_bytes, vmem_limit = _tpu_budgets()
    tile_n = _pick_tile_rows(n, c, y_pred.dtype.itemsize, target_bytes)
    num_tiles = pl.cdiv(n, tile_n)
    yt2d = y_target.astype(jnp.int32).reshape(n, 1)

    cost = pl.CostEstimate(
        flops=int(6 * n * c),
        transcendentals=int(n * c + n),
        bytes_accessed=int(y_pred.dtype.itemsize * n * c + 4 * n + 4 * num_tiles),
    )
    partials = pl.pallas_call(
        functools.partial(_ce_partial_kernel, n),
        out_shape=jax.ShapeDtypeStruct((num_tiles, 1, 1), jnp.float32),
        grid=(num_tiles,),
        in_specs=[
            pl.BlockSpec((tile_n, c), lambda i: (i, 0)),
            pl.BlockSpec((tile_n, 1), lambda i: (i, 0)),
        ],
        out_specs=pl.BlockSpec((1, 1, 1), lambda i: (i, 0, 0)),
        compiler_params=pltpu.CompilerParams(
            dimension_semantics=("parallel",),
            vmem_limit_bytes=vmem_limit,
        ),
        cost_estimate=cost,
    )(y_pred, yt2d)
    return jnp.sum(partials) * jnp.float32(1.0 / n)


# ---------------------------------------------------------------------------
# MSE: one partial squared-error sum per row-tile (parallel grid axis).
# ---------------------------------------------------------------------------
def _mse_partial_kernel(m_valid, a_ref, b_ref, out_ref):
    pid = pl.program_id(0)
    a = a_ref[...].astype(jnp.float32)
    b = b_ref[...].astype(jnp.float32)
    tm, _ = a.shape
    d = a - b
    row_ids = pid * tm + jax.lax.broadcasted_iota(jnp.int32, (tm, 1), 0)
    sq = jnp.where(row_ids < m_valid, d * d, 0.0)
    out_ref[...] = jnp.sum(sq).reshape(1, 1, 1)


def _mse_mean(a, b):
    assert a.shape == b.shape and a.dtype == b.dtype
    if a.ndim == 1:
        a = a.reshape(1, -1)
        b = b.reshape(1, -1)
    elif a.ndim > 2:
        a = a.reshape(-1, a.shape[-1])
        b = b.reshape(-1, b.shape[-1])
    m, c = a.shape
    total = m * c

    target_bytes, vmem_limit = _tpu_budgets()
    tile_m = _pick_tile_rows(m, c, a.dtype.itemsize, target_bytes)
    num_tiles = pl.cdiv(m, tile_m)

    cost = pl.CostEstimate(
        flops=int(3 * total),
        transcendentals=0,
        bytes_accessed=int(2 * a.dtype.itemsize * total + 4 * num_tiles),
    )
    partials = pl.pallas_call(
        functools.partial(_mse_partial_kernel, m),
        out_shape=jax.ShapeDtypeStruct((num_tiles, 1, 1), jnp.float32),
        grid=(num_tiles,),
        in_specs=[
            pl.BlockSpec((tile_m, c), lambda i: (i, 0)),
            pl.BlockSpec((tile_m, c), lambda i: (i, 0)),
        ],
        out_specs=pl.BlockSpec((1, 1, 1), lambda i: (i, 0, 0)),
        compiler_params=pltpu.CompilerParams(
            dimension_semantics=("parallel",),
            vmem_limit_bytes=vmem_limit,
        ),
        cost_estimate=cost,
    )(a, b)
    return jnp.sum(partials) * jnp.float32(1.0 / total)


def semi_sl_loss(y_pred, y_target, unlabeled_y_tilde_pred, unlabeled_y_pred,
                 *, beta):
    """Pallas implementation of SemiSLLoss.forward.

    y_pred:                 [N, C] float logits
    y_target:               [N]    int class indices
    unlabeled_y_tilde_pred: [M, C] float
    unlabeled_y_pred:       [M, C] float
    beta:                   python float or traced scalar (no kernel recompile)
    returns scalar float32 loss
    """
    ce = _cross_entropy_mean(y_pred, y_target)
    mse = _mse_mean(unlabeled_y_tilde_pred, unlabeled_y_pred)
    return ce + jnp.asarray(beta, jnp.float32) * mse


def _reference(y_pred, y_target, ut, up, beta):
    logp = jax.nn.log_softmax(y_pred.astype(jnp.float32), axis=-1)
    ce = -jnp.mean(jnp.take_along_axis(logp, y_target[:, None], axis=-1))
    mse = jnp.mean((ut.astype(jnp.float32) - up.astype(jnp.float32)) ** 2)
    return ce + beta * mse


if __name__ == "__main__":
    key = jax.random.PRNGKey(0)
    k1, k2, k3, k4 = jax.random.split(key, 4)

    N, C, M = 8, 16, 8
    beta = 0.5

    y_pred = jax.random.normal(k1, (N, C), dtype=jnp.float32)
    y_target = jax.random.randint(k2, (N,), 0, C, dtype=jnp.int32)
    u_tilde = jax.random.normal(k3, (M, C), dtype=jnp.float32)
    u_pred = jax.random.normal(k4, (M, C), dtype=jnp.float32)

    loss = semi_sl_loss(y_pred, y_target, u_tilde, u_pred, beta=beta)
    loss = jax.block_until_ready(loss)

    ref = _reference(y_pred, y_target, u_tilde, u_pred, beta)
    assert jnp.allclose(loss, ref, rtol=1e-5, atol=1e-5), (loss, ref)

    print("KERNEL_OK")
</pallas_src>

<mosaic_0001>
module attributes {stable_mosaic.version = 11 : i64} {
  func.func @_ce_partial_kernel(%arg0: i32, %arg1: memref<8x16xf32, #tpu.memory_space<vmem>>, %arg2: memref<8x1xi32, #tpu.memory_space<vmem>>, %arg3: memref<1x1x1xf32, #tpu.memory_space<vmem>>) attributes {dimension_semantics = [#tpu.dimension_semantics<parallel>], iteration_bounds = array<i64: 1>, scalar_prefetch = 0 : i64, scratch_operands = 0 : i64, tpu.core_type = #tpu.core_type<tc>, window_params = [{transform_indices = @transform_0, window_bounds = array<i64: 8, 16>}, {transform_indices = @transform_1, window_bounds = array<i64: 8, 1>}, {transform_indices = @transform_2, window_bounds = array<i64: 1, 1, 1>}]} {
    %c0 = arith.constant 0 : index
    %c0_0 = arith.constant 0 : index
    %0 = vector.load %arg1[%c0, %c0_0] : memref<8x16xf32, #tpu.memory_space<vmem>>, vector<8x16xf32>
    %c0_1 = arith.constant 0 : index
    %c0_2 = arith.constant 0 : index
    %1 = vector.load %arg2[%c0_1, %c0_2] : memref<8x1xi32, #tpu.memory_space<vmem>>, vector<8x1xi32>
    %cst = arith.constant dense<0xFF800000> : vector<8xf32>
    %2 = vector.multi_reduction <maximumf>, %0, %cst [1] : vector<8x16xf32> to vector<8xf32>
    %3 = vector.shape_cast %2 : vector<8xf32> to vector<8x1xf32>
    %4 = vector.broadcast %3 : vector<8x1xf32> to vector<8x16xf32>
    %5 = arith.subf %0, %4 : vector<8x16xf32>
    %6 = math.exp %5 : vector<8x16xf32>
    %cst_3 = arith.constant dense<0.000000e+00> : vector<8xf32>
    %7 = vector.multi_reduction <add>, %6, %cst_3 [1] : vector<8x16xf32> to vector<8xf32>
    %8 = vector.shape_cast %7 : vector<8xf32> to vector<8x1xf32>
    %9 = math.log %8 : vector<8x1xf32>
    %10 = arith.addf %9, %3 : vector<8x1xf32>
    %11 = tpu.iota {dimensions = array<i32: 1>} : vector<8x16xi32>
    %12 = vector.broadcast %1 : vector<8x1xi32> to vector<8x16xi32>
    %13 = arith.cmpi eq, %11, %12 : vector<8x16xi32>
    %cst_4 = arith.constant 0.000000e+00 : f32
    %14 = vector.broadcast %cst_4 : f32 to vector<8x16xf32>
    %15 = arith.select %13, %0, %14 : vector<8x16xi1>, vector<8x16xf32>
    %cst_5 = arith.constant dense<0.000000e+00> : vector<8xf32>
    %16 = vector.multi_reduction <add>, %15, %cst_5 [1] : vector<8x16xf32> to vector<8xf32>
    %17 = vector.shape_cast %16 : vector<8xf32> to vector<8x1xf32>
    %c8_i32 = arith.constant 8 : i32
    %18 = arith.muli %arg0, %c8_i32 : i32
    %19 = tpu.iota {dimensions = array<i32: 0>} : vector<8x1xi32>
    %20 = vector.broadcast %18 : i32 to vector<8x1xi32>
    %21 = arith.addi %20, %19 : vector<8x1xi32>
    %c8_i32_6 = arith.constant 8 : i32
    %22 = vector.broadcast %c8_i32_6 : i32 to vector<8x1xi32>
    %23 = arith.cmpi slt, %21, %22 : vector<8x1xi32>
    %24 = arith.subf %10, %17 : vector<8x1xf32>
    %cst_7 = arith.constant 0.000000e+00 : f32
    %25 = vector.broadcast %cst_7 : f32 to vector<8x1xf32>
    %26 = arith.select %23, %24, %25 : vector<8x1xi1>, vector<8x1xf32>
    %27 = vector.shape_cast %26 : vector<8x1xf32> to vector<1x8x1xf32>
    %cst_8 = arith.constant dense<0.000000e+00> : vector<1xf32>
    %28 = vector.multi_reduction <add>, %27, %cst_8 [1, 2] : vector<1x8x1xf32> to vector<1xf32>
    %29 = vector.shape_cast %28 : vector<1xf32> to vector<1x1x1xf32>
    %30 = vector.extract %29[0, 0, 0] : f32 from vector<1x1x1xf32>
    %31 = vector.broadcast %30 : f32 to vector<1x1x1xf32>
    %c0_9 = arith.constant 0 : index
    %c0_10 = arith.constant 0 : index
    %c0_11 = arith.constant 0 : index
    %32 = vector.load %arg3[%c0_9, %c0_10, %c0_11] : memref<1x1x1xf32, #tpu.memory_space<vmem>>, vector<1x1x1xf32>
    tpu.vector_store %arg3[%c0_9, %c0_10, %c0_11], %31 {strides = array<i32>} : memref<1x1x1xf32, #tpu.memory_space<vmem>>, vector<1x1x1xf32>,
    return
  }
  func.func @transform_0(%arg0: i32) -> (i32, i32) {
    %c0_i32 = arith.constant 0 : i32
    %c0_i32_0 = arith.constant 0 : i32
    return %arg0, %c0_i32 : i32, i32
  }
  func.func @transform_1(%arg0: i32) -> (i32, i32) {
    %c0_i32 = arith.constant 0 : i32
    %c0_i32_0 = arith.constant 0 : i32
    return %arg0, %c0_i32 : i32, i32
  }
  func.func @transform_2(%arg0: i32) -> (i32, i32, i32) {
    %c0_i32 = arith.constant 0 : i32
    %c0_i32_0 = arith.constant 0 : i32
    %c0_i32_1 = arith.constant 0 : i32
    return %arg0, %c0_i32, %c0_i32_0 : i32, i32, i32
  }
}

</mosaic_0001>

<llo_original>
// kernel: tpu_custom_call.1
$region0: #{tpu_custom_call.1}
  #allocation0 [shape = 'u32[]', space=smem, size = 0x4, offset = 0x4, fixed_abs, tag = 'smem constant byte address 0x4 - core index']
  #allocation1 [shape = 'u32[144,128]{1,0:T(1,128)}', space=vmem, size = 0x12000, scoped, tag = 'internal scratch']
  %s0 = inlined_call_operand.vmem [shape: f32[8,16], index: 0, kind: input, shape index: {}]
  %s1 = inlined_call_operand.vmem [shape: s32[8,1], index: 1, kind: input, shape index: {}]
  %s2 = inlined_call_operand.hbm [shape: f32[1,1,1], index: 2, kind: output, shape index: {}]
  %s3 = sld [smem:[#allocation0]]
  $region18: #{tpu_custom_call.1} parent=0
    _
  %s5 = ssub.s32 1, %s3
  %s6 = scalar_select 0, %s5, %s3
  $region1: #{tpu_custom_call.1} parent=0
    #allocation2 [shape = 'u8[512]{0}', space=vmem, size = 0x400, scoped, tag = 'output window, operand 0, single buffered']
    #allocation3 [shape = 's32[1]{0}', space=sflag, size = 0x4, scoped, tag = 'scoped memory for tpu_custom_call.1']
    %7 = vsyncpa [#allocation3], 0
    // Predicated region
    $region2: #{tpu_custom_call.1} parent=1 // pred_check
      _
    $region3: #{tpu_custom_call.1} parent=1 // pred_check_branch
      %9 = sbr.rel (0) target = $region5
    $region4: #{tpu_custom_call.1} parent=1 // pred_region
      _
    $region5: #{tpu_custom_call.1} parent=1 // pred_fallthru
      _
    // Predicated region
    $region6: #{tpu_custom_call.1} parent=1 // pred_check
      _
    $region7: #{tpu_custom_call.1} parent=1 // pred_check_branch
      %11 = sbr.rel (0) target = $region9
    $region8: #{tpu_custom_call.1} parent=1 // pred_region
      _
    $region9: #{tpu_custom_call.1} parent=1 // pred_fallthru
      _
    %v12 = vld [vmem:[%s0] sm:$0xff]
    %v13 = vld [vmem:[%s1] sm:$0xff]
    %vm14 = vcmask 130048
    %v15 = vsel %vm14, %v12, -inf
    %16 = vmax.xlane.f32.xlu0 %v15
    %v17 = vpop.xlane.xlu0 %16
    %v18 = vsub.f32 %v12, %v17
    %v19 = vmul.f32 %v18, 1.442695
    %v20 = vpow.pop %v19
    %v21 = vsel %vm14, %v20, 0.0
    %22 = vadd.xlane.f32.xlu0 %v21
    %v23 = vpop.xlane.xlu0 %22
    %v24 = vlog2.pop %v23
    %v25 = vmul.f32 %v24, 0.6931472
    %v26 = vadd.f32 %v25, %v17
    %v27 = vlaneseq
    %v28 = vand.u32 %v27, 127
    %29 = vset.pattern.permute.xlu0 0
    %30 = vperm.xlu0 %29, %v13
    %v31 = vpop.permute.xlu0 %30
    %vm32 = vcmp.eq.s32.totalorder %v28, %v31
    %v33 = vsel %vm32, %v12, 0.0
    %v34 = vsel %vm14, %v33, 0.0
    %35 = vadd.xlane.f32.xlu0 %v34
    %v36 = vpop.xlane.xlu0 %35
    %s37 = smul.u32 0, 8
    %v38 = vlaneseq
    %v39 = vshrl.u32 %v38, 7
    %v40 = vstv %s37
    %v41 = vadd.s32 %v40, %v39
    %vm42 = vcmp.lt.s32.totalorder %v41, 8
    %v43 = vsub.f32 %v26, %v36
    %v44 = vsel %vm42, %v43, 0.0
    %vm45 = vcmask 7168
    %v46 = vsel %vm45, %v44, 0.0
    %47 = vadd.xlane.f32.xlu0 %v46
    %v48 = vpop.xlane.xlu0 %47
    %v49 = vrot.slane %v48, 4
    %v50 = vadd.f32 %v48, %v49
    %v51 = vrot.slane %v50, 2
    %v52 = vadd.f32 %v50, %v51
    %v53 = vrot.slane %v52, 1
    %v54 = vadd.f32 %v52, %v53
    %s55 = vtos %v54
    %v56 = vstv %s55
    %vm57 = vcmask 0
    %58 = vst.msk [vmem:[#allocation2] sm:$0x1] %vm57, %v56
    // Predicated region
    $region10: #{tpu_custom_call.1} parent=1 // pred_check
      _
    $region11: #{tpu_custom_call.1} parent=1 // pred_check_branch
      %60 = sbr.rel (0) target = $region13
    $region12: #{tpu_custom_call.1} parent=1 // pred_region
      %s62 = ssub.s32 16, 16
      %63 = vsyncadd [#allocation3], %s62
      %s65 = sshll.u32 [#allocation2], 4
      %s66 = int_to_ptr.vmem [resolvable:$true] %s65
      %68 = dma.vmem_to_hbm [thread:$0]  %s66, 16, %s2, [#allocation3]
    $region13: #{tpu_custom_call.1} parent=1 // pred_fallthru
      _
    // Predicated region
    $region14: #{tpu_custom_call.1} parent=1 // pred_check
      _
    $region15: #{tpu_custom_call.1} parent=1 // pred_check_branch
      %70 = sbr.rel (0) target = $region17
    $region16: #{tpu_custom_call.1} parent=1 // pred_region
      %71 = dma.done [#allocation3], 16
    $region17: #{tpu_custom_call.1} parent=1 // pred_fallthru
      _
    %72 = vsyncpa [#allocation3], 1

</llo_original>
